<compile_context>
chip_gen: v7x
topology: tpu7x:2x2x1
jax: 0.10.0
libtpu: 0.0.40
codegen_flags: <defaults>
</compile_context>

<pallas_src>
import jax
import jax.numpy as jnp
from jax.experimental import pallas as pl
from jax.experimental.pallas import tpu as pltpu

LANE = 128            # TPU lane width: hidden / fan-out dims are padded to this
DEFAULT_TILE_B = 1024  # rows per grid step (multiple of 8); sweep 512/1024/2048 for huge batches


def _round_up(x, m):
    return ((x + m - 1) // m) * m


def actor_mlp_kernel(x_ref, w1_ref, b1_ref, w2_ref, b2_ref, w3_ref, b3_ref, o_ref):
    """Whole 3-layer MLP per batch tile: 3 MXU matmuls + VPU ReLU + EUP tanh."""
    # x tile streamed unpadded: (tile_b, num_inputs); Mosaic masks the K=17 contraction.
    x = x_ref[...].astype(w1_ref.dtype)

    h1 = jnp.dot(x, w1_ref[...], preferred_element_type=jnp.float32) + b1_ref[...]
    h1 = jnp.maximum(h1, 0.0).astype(w2_ref.dtype)

    h2 = jnp.dot(h1, w2_ref[...], preferred_element_type=jnp.float32) + b2_ref[...]
    h2 = jnp.maximum(h2, 0.0).astype(w3_ref.dtype)

    out = jnp.dot(h2, w3_ref[...], preferred_element_type=jnp.float32) + b3_ref[...]

    n_out = o_ref.shape[-1]  # real num_outputs (narrow writeback)
    o_ref[...] = jnp.tanh(out[:, :n_out]).astype(o_ref.dtype)


def pad_linear_params(w, b, in_pad, out_pad, dtype=jnp.float32):
    """Zero-pad a [fan_in, fan_out] weight / [1, fan_out] bias to the given padded dims.

    Weight is stored in `dtype` (f32 or bf16 MXU operands); bias stays f32 because it is
    added to the f32 MXU accumulator.
    """
    fan_in, fan_out = w.shape
    w_p = jnp.zeros((in_pad, out_pad), dtype).at[:fan_in, :fan_out].set(w.astype(dtype))
    b_p = jnp.zeros((1, out_pad), jnp.float32).at[:, :fan_out].set(
        jnp.reshape(b, (1, -1)).astype(jnp.float32))
    return w_p, b_p


def actor_forward(x, padded_params, num_outputs, tile_b=DEFAULT_TILE_B):
    """x: [batch, num_inputs]; padded_params: (w1,b1,w2,b2,w3,b3) from pad_linear_params."""
    w1, b1, w2, b2, w3, b3 = padded_params
    batch, num_inputs = x.shape
    assert w1.shape[0] == num_inputs, "w1 fan-in must match unpadded num_inputs"

    # bf16 streaming (v6e/v7x): stream activations in the weights' operand dtype.
    if x.dtype != w1.dtype:
        x = x.astype(w1.dtype)

    # Shrink the tile for tiny batches; keep it a multiple of 8 (f32 sublane packing).
    tile_b = min(tile_b, _round_up(max(batch, 1), 8))
    num_tiles = pl.cdiv(batch, tile_b)
    if num_tiles < 2 and batch >= 16:
        # Ensure >=2 grid steps so ("parallel",) can shard across both TCs on v7x.
        tile_b = _round_up(pl.cdiv(batch, 2), 8)
        num_tiles = pl.cdiv(batch, tile_b)
    grid = (num_tiles,)

    flops = 2 * batch * (w1.shape[0] * w1.shape[1]
                         + w2.shape[0] * w2.shape[1]
                         + w3.shape[0] * w3.shape[1])
    bytes_accessed = int(
        x.size * x.dtype.itemsize
        + batch * num_outputs * 4
        + sum(int(p.size) * p.dtype.itemsize for p in padded_params))
    cost = pl.CostEstimate(flops=int(flops),
                           transcendentals=int(batch * num_outputs),
                           bytes_accessed=bytes_accessed)

    def resident(p):
        # Constant block index -> DMA'd once, stays resident in VMEM across grid steps.
        return pl.BlockSpec(p.shape, lambda i: (0, 0))

    out = pl.pallas_call(
        actor_mlp_kernel,
        out_shape=jax.ShapeDtypeStruct((batch, num_outputs), jnp.float32),
        grid=grid,
        in_specs=[
            pl.BlockSpec((tile_b, num_inputs), lambda i: (i, 0)),  # unpadded streamed x
            resident(w1), resident(b1),
            resident(w2), resident(b2),
            resident(w3), resident(b3),
        ],
        out_specs=pl.BlockSpec((tile_b, num_outputs), lambda i: (i, 0)),  # narrow writeback
        compiler_params=pltpu.CompilerParams(
            dimension_semantics=("parallel",)),  # megacore batch sharding on v7x
        cost_estimate=cost,
    )(x, w1, b1, w2, b2, w3, b3)
    return out


def init_linear(key, fan_in, fan_out):
    """Mirror PyTorch nn.Linear default init; weight stored transposed [fan_in, fan_out]."""
    kw, kb = jax.random.split(key)
    bound = 1.0 / jnp.sqrt(jnp.float32(fan_in))
    w = jax.random.uniform(kw, (fan_in, fan_out), jnp.float32, -bound, bound)
    b = jax.random.uniform(kb, (1, fan_out), jnp.float32, -bound, bound)
    return w, b


def _reference(x, params):
    w1, b1, w2, b2, w3, b3 = params
    h1 = jnp.maximum(x @ w1 + b1, 0.0)
    h2 = jnp.maximum(h1 @ w2 + b2, 0.0)
    return jnp.tanh(h2 @ w3 + b3)


if __name__ == "__main__":
    # HalfCheetah-ish dims.
    batch = 2
    num_inputs = 17      # observation dim
    hidden_size = 32
    num_outputs = 6      # action_space.shape[0]

    key = jax.random.PRNGKey(0)
    k_x, k1, k2, k3, k_big = jax.random.split(key, 5)

    x = jax.random.normal(k_x, (batch, num_inputs), jnp.float32)
    w1, b1 = init_linear(k1, num_inputs, hidden_size)
    w2, b2 = init_linear(k2, hidden_size, hidden_size)
    w3, b3 = init_linear(k3, hidden_size, num_outputs)
    raw_params = (w1, b1, w2, b2, w3, b3)

    # One-time padding at model-build time: only hidden / fan-out dims are lane-padded;
    # w1's fan-in stays 17 so x can be streamed unpadded.
    f32_params = (
        *pad_linear_params(w1, b1, num_inputs, LANE),
        *pad_linear_params(w2, b2, LANE, LANE),
        *pad_linear_params(w3, b3, LANE, LANE),
    )

    # Small-batch path (single ragged tile).
    out = jax.block_until_ready(actor_forward(x, f32_params, num_outputs))
    ref = _reference(x, raw_params)
    assert out.shape == (batch, num_outputs)
    assert jnp.allclose(out, ref, atol=1e-5, rtol=1e-5)

    # Large batch: >=2 grid steps (megacore sharding on v7x) + ragged last tile (1000 rows).
    x_big = jax.random.normal(k_big, (1000, num_inputs), jnp.float32)
    out_big = jax.block_until_ready(actor_forward(x_big, f32_params, num_outputs))
    ref_big = _reference(x_big, raw_params)
    assert out_big.shape == (1000, num_outputs)
    assert jnp.allclose(out_big, ref_big, atol=1e-5, rtol=1e-5)

    # bf16 operand/streaming path (v6e/v7x perf item); f32 accumulation, relaxed tolerance.
    bf16_params = (
        *pad_linear_params(w1, b1, num_inputs, LANE, dtype=jnp.bfloat16),
        *pad_linear_params(w2, b2, LANE, LANE, dtype=jnp.bfloat16),
        *pad_linear_params(w3, b3, LANE, LANE, dtype=jnp.bfloat16),
    )
    out_bf16 = jax.block_until_ready(actor_forward(x_big, bf16_params, num_outputs))
    assert out_bf16.shape == (1000, num_outputs)
    assert jnp.allclose(out_bf16, ref_big, atol=5e-2, rtol=5e-2)

    print("KERNEL_OK")
</pallas_src>

<mosaic_0001>
module attributes {stable_mosaic.version = 11 : i64} {
  func.func @actor_mlp_kernel(%arg0: i32, %arg1: memref<8x17xf32, #tpu.memory_space<vmem>>, %arg2: memref<17x128xf32, #tpu.memory_space<vmem>>, %arg3: memref<1x128xf32, #tpu.memory_space<vmem>>, %arg4: memref<128x128xf32, #tpu.memory_space<vmem>>, %arg5: memref<1x128xf32, #tpu.memory_space<vmem>>, %arg6: memref<128x128xf32, #tpu.memory_space<vmem>>, %arg7: memref<1x128xf32, #tpu.memory_space<vmem>>, %arg8: memref<8x6xf32, #tpu.memory_space<vmem>>) attributes {dimension_semantics = [#tpu.dimension_semantics<parallel>], iteration_bounds = array<i64: 1>, scalar_prefetch = 0 : i64, scratch_operands = 0 : i64, tpu.core_type = #tpu.core_type<tc>, window_params = [{transform_indices = @transform_0, window_bounds = array<i64: 8, 17>}, {pipeline_mode = #tpu.pipeline_mode<synchronous>, transform_indices = @transform_1, window_bounds = array<i64: 17, 128>}, {pipeline_mode = #tpu.pipeline_mode<synchronous>, transform_indices = @transform_2, window_bounds = array<i64: 1, 128>}, {pipeline_mode = #tpu.pipeline_mode<synchronous>, transform_indices = @transform_3, window_bounds = array<i64: 128, 128>}, {pipeline_mode = #tpu.pipeline_mode<synchronous>, transform_indices = @transform_4, window_bounds = array<i64: 1, 128>}, {pipeline_mode = #tpu.pipeline_mode<synchronous>, transform_indices = @transform_5, window_bounds = array<i64: 128, 128>}, {pipeline_mode = #tpu.pipeline_mode<synchronous>, transform_indices = @transform_6, window_bounds = array<i64: 1, 128>}, {transform_indices = @transform_7, window_bounds = array<i64: 8, 6>}]} {
    %c0 = arith.constant 0 : index
    %c0_0 = arith.constant 0 : index
    %0 = vector.load %arg1[%c0, %c0_0] : memref<8x17xf32, #tpu.memory_space<vmem>>, vector<8x17xf32>
    %c0_1 = arith.constant 0 : index
    %c0_2 = arith.constant 0 : index
    %1 = vector.load %arg2[%c0_1, %c0_2] : memref<17x128xf32, #tpu.memory_space<vmem>>, vector<17x128xf32>
    %cst = arith.constant dense<0.000000e+00> : vector<8x128xf32>
    %2 = tpu.matmul %0, %1, %cst {dimension_numbers = #tpu.dot_dimension_numbers<[1], [0], [0], [1], [0, 0, 1, 1], [], []>} : vector<8x17xf32>, vector<17x128xf32>, vector<8x128xf32> -> vector<8x128xf32>
    %c0_3 = arith.constant 0 : index
    %c0_4 = arith.constant 0 : index
    %3 = vector.load %arg3[%c0_3, %c0_4] : memref<1x128xf32, #tpu.memory_space<vmem>>, vector<1x128xf32>
    %4 = vector.broadcast %3 : vector<1x128xf32> to vector<8x128xf32>
    %5 = arith.addf %2, %4 : vector<8x128xf32>
    %cst_5 = arith.constant 0.000000e+00 : f32
    %6 = vector.broadcast %cst_5 : f32 to vector<8x128xf32>
    %7 = arith.maximumf %5, %6 : vector<8x128xf32>
    %c0_6 = arith.constant 0 : index
    %c0_7 = arith.constant 0 : index
    %8 = vector.load %arg4[%c0_6, %c0_7] : memref<128x128xf32, #tpu.memory_space<vmem>>, vector<128x128xf32>
    %cst_8 = arith.constant dense<0.000000e+00> : vector<8x128xf32>
    %9 = tpu.matmul %7, %8, %cst_8 {dimension_numbers = #tpu.dot_dimension_numbers<[1], [0], [0], [1], [0, 0, 1, 1], [], []>} : vector<8x128xf32>, vector<128x128xf32>, vector<8x128xf32> -> vector<8x128xf32>
    %c0_9 = arith.constant 0 : index
    %c0_10 = arith.constant 0 : index
    %10 = vector.load %arg5[%c0_9, %c0_10] : memref<1x128xf32, #tpu.memory_space<vmem>>, vector<1x128xf32>
    %11 = vector.broadcast %10 : vector<1x128xf32> to vector<8x128xf32>
    %12 = arith.addf %9, %11 : vector<8x128xf32>
    %cst_11 = arith.constant 0.000000e+00 : f32
    %13 = vector.broadcast %cst_11 : f32 to vector<8x128xf32>
    %14 = arith.maximumf %12, %13 : vector<8x128xf32>
    %c0_12 = arith.constant 0 : index
    %c0_13 = arith.constant 0 : index
    %15 = vector.load %arg6[%c0_12, %c0_13] : memref<128x128xf32, #tpu.memory_space<vmem>>, vector<128x128xf32>
    %cst_14 = arith.constant dense<0.000000e+00> : vector<8x128xf32>
    %16 = tpu.matmul %14, %15, %cst_14 {dimension_numbers = #tpu.dot_dimension_numbers<[1], [0], [0], [1], [0, 0, 1, 1], [], []>} : vector<8x128xf32>, vector<128x128xf32>, vector<8x128xf32> -> vector<8x128xf32>
    %c0_15 = arith.constant 0 : index
    %c0_16 = arith.constant 0 : index
    %17 = vector.load %arg7[%c0_15, %c0_16] : memref<1x128xf32, #tpu.memory_space<vmem>>, vector<1x128xf32>
    %18 = vector.broadcast %17 : vector<1x128xf32> to vector<8x128xf32>
    %19 = arith.addf %16, %18 : vector<8x128xf32>
    %20 = vector.extract_strided_slice %19 {offsets = [0, 0], sizes = [8, 6], strides = [1, 1]} : vector<8x128xf32> to vector<8x6xf32>
    %21 = math.tanh %20 : vector<8x6xf32>
    %c0_17 = arith.constant 0 : index
    %c0_18 = arith.constant 0 : index
    %22 = vector.load %arg8[%c0_17, %c0_18] : memref<8x6xf32, #tpu.memory_space<vmem>>, vector<8x6xf32>
    tpu.vector_store %arg8[%c0_17, %c0_18], %21 {strides = array<i32>} : memref<8x6xf32, #tpu.memory_space<vmem>>, vector<8x6xf32>,
    return
  }
  func.func @transform_0(%arg0: i32) -> (i32, i32) {
    %c0_i32 = arith.constant 0 : i32
    %c0_i32_0 = arith.constant 0 : i32
    return %arg0, %c0_i32 : i32, i32
  }
  func.func @transform_1(%arg0: i32) -> (i32, i32) {
    %c0_i32 = arith.constant 0 : i32
    %c0_i32_0 = arith.constant 0 : i32
    %c0_i32_1 = arith.constant 0 : i32
    return %c0_i32, %c0_i32_0 : i32, i32
  }
  func.func @transform_2(%arg0: i32) -> (i32, i32) {
    %c0_i32 = arith.constant 0 : i32
    %c0_i32_0 = arith.constant 0 : i32
    %c0_i32_1 = arith.constant 0 : i32
    return %c0_i32, %c0_i32_0 : i32, i32
  }
  func.func @transform_3(%arg0: i32) -> (i32, i32) {
    %c0_i32 = arith.constant 0 : i32
    %c0_i32_0 = arith.constant 0 : i32
    %c0_i32_1 = arith.constant 0 : i32
    return %c0_i32, %c0_i32_0 : i32, i32
  }
  func.func @transform_4(%arg0: i32) -> (i32, i32) {
    %c0_i32 = arith.constant 0 : i32
    %c0_i32_0 = arith.constant 0 : i32
    %c0_i32_1 = arith.constant 0 : i32
    return %c0_i32, %c0_i32_0 : i32, i32
  }
  func.func @transform_5(%arg0: i32) -> (i32, i32) {
    %c0_i32 = arith.constant 0 : i32
    %c0_i32_0 = arith.constant 0 : i32
    %c0_i32_1 = arith.constant 0 : i32
    return %c0_i32, %c0_i32_0 : i32, i32
  }
  func.func @transform_6(%arg0: i32) -> (i32, i32) {
    %c0_i32 = arith.constant 0 : i32
    %c0_i32_0 = arith.constant 0 : i32
    %c0_i32_1 = arith.constant 0 : i32
    return %c0_i32, %c0_i32_0 : i32, i32
  }
  func.func @transform_7(%arg0: i32) -> (i32, i32) {
    %c0_i32 = arith.constant 0 : i32
    %c0_i32_0 = arith.constant 0 : i32
    return %arg0, %c0_i32 : i32, i32
  }
}

</mosaic_0001>

<llo_original>
// kernel: tpu_custom_call.1
$region0: #{tpu_custom_call.1}
  #allocation0 [shape = 'u32[]', space=smem, size = 0x4, offset = 0x4, fixed_abs, tag = 'smem constant byte address 0x4 - core index']
  #allocation1 [shape = 'u32[144,128]{1,0:T(1,128)}', space=vmem, size = 0x12000, scoped, tag = 'internal scratch']
  %s0 = inlined_call_operand.hbm [shape: f32[2,17], index: 0, kind: input, shape index: {}]
  %s1 = inlined_call_operand.hbm [shape: f32[17,128], index: 1, kind: input, shape index: {}]
  %s2 = inlined_call_operand.vmem [shape: f32[1,128], index: 2, kind: input, shape index: {}]
  %s3 = inlined_call_operand.hbm [shape: f32[128,128], index: 3, kind: input, shape index: {}]
  %s4 = inlined_call_operand.vmem [shape: f32[1,128], index: 4, kind: input, shape index: {}]
  %s5 = inlined_call_operand.hbm [shape: f32[128,128], index: 5, kind: input, shape index: {}]
  %s6 = inlined_call_operand.vmem [shape: f32[1,128], index: 6, kind: input, shape index: {}]
  %s7 = inlined_call_operand.hbm [shape: f32[2,6], index: 7, kind: output, shape index: {}]
  %s8 = sld [smem:[#allocation0]]
  $region54: #{tpu_custom_call.1} parent=0
    _
  %s10 = ssub.s32 1, %s8
  %s11 = scalar_select 0, %s10, %s8
  $region1: #{tpu_custom_call.1} parent=0
    #allocation2 [shape = 'u8[4096]{0}', space=vmem, size = 0x1000, scoped, tag = 'input window, operand 0, single buffered']
    #allocation3 [shape = 's32[1]{0}', space=sflag, size = 0x4, scoped, tag = 'scoped memory for tpu_custom_call.1']
    #allocation4 [shape = 's32[1]{0}', space=sflag, size = 0x4, scoped, tag = 'scoped memory for tpu_custom_call.1']
    #allocation5 [shape = 'u8[12288]{0}', space=vmem, size = 0x3000, scoped, tag = 'input window, operand 1, single buffered']
    #allocation6 [shape = 's32[1]{0}', space=sflag, size = 0x4, scoped, tag = 'scoped memory for tpu_custom_call.1']
    #allocation7 [shape = 'u8[65536]{0}', space=vmem, size = 0x10000, scoped, tag = 'input window, operand 3, single buffered']
    #allocation8 [shape = 'u8[65536]{0}', space=vmem, size = 0x10000, scoped, tag = 'input window, operand 5, single buffered']
    #allocation9 [shape = 's32[1]{0}', space=sflag, size = 0x4, scoped, tag = 'scoped memory for tpu_custom_call.1']
    #allocation10 [shape = 'u8[4096]{0}', space=vmem, size = 0x1000, scoped, tag = 'output window, operand 0, single buffered']
    %12 = vsyncpa [#allocation3], 0
    %13 = vsyncpa [#allocation6], 0
    %14 = vsyncpa [#allocation9], 0
    %15 = vsyncpa [#allocation4], 0
    // Predicated region
    $region2: #{tpu_custom_call.1} parent=1 // pred_check
      _
    $region3: #{tpu_custom_call.1} parent=1 // pred_check_branch
      %17 = sbr.rel (0) target = $region5
    $region4: #{tpu_custom_call.1} parent=1 // pred_region
      %s19 = ssub.s32 128, 32
      %20 = vsyncadd [#allocation3], %s19
      %s21 = sshll.u32 [#allocation2], 4
      %s22 = int_to_ptr.vmem [resolvable:$true] %s21
      %27 = dma.hbm_to_vmem [thread:$0]  %s0, 32, %s22, [#allocation3], 32, 32, 2
    $region5: #{tpu_custom_call.1} parent=1 // pred_fallthru
      _
    // Predicated region
    $region6: #{tpu_custom_call.1} parent=1 // pred_check
      _
    $region7: #{tpu_custom_call.1} parent=1 // pred_check_branch
      %29 = sbr.rel (0) target = $region9
    $region8: #{tpu_custom_call.1} parent=1 // pred_region
      %s31 = ssub.s32 384, 384
      %32 = vsyncadd [#allocation6], %s31
      %s33 = sshll.u32 [#allocation5], 4
      %s34 = int_to_ptr.vmem [resolvable:$true] %s33
      %39 = dma.hbm_to_vmem [thread:$0]  %s1, 384, %s34, [#allocation6], 128, 128, 8
    $region9: #{tpu_custom_call.1} parent=1 // pred_fallthru
      _
    // Predicated region
    $region10: #{tpu_custom_call.1} parent=1 // pred_check
      _
    $region11: #{tpu_custom_call.1} parent=1 // pred_check_branch
      %41 = sbr.rel (0) target = $region13
    $region12: #{tpu_custom_call.1} parent=1 // pred_region
      _
    $region13: #{tpu_custom_call.1} parent=1 // pred_fallthru
      _
    // Predicated region
    $region14: #{tpu_custom_call.1} parent=1 // pred_check
      _
    $region15: #{tpu_custom_call.1} parent=1 // pred_check_branch
      %43 = sbr.rel (0) target = $region17
    $region16: #{tpu_custom_call.1} parent=1 // pred_region
      %s45 = ssub.s32 2048, 2048
      %46 = vsyncadd [#allocation6], %s45
      %s47 = sshll.u32 [#allocation7], 4
      %s48 = int_to_ptr.vmem [resolvable:$true] %s47
      %53 = dma.hbm_to_vmem [thread:$0]  %s3, 2048, %s48, [#allocation6], 128, 128, 8
    $region17: #{tpu_custom_call.1} parent=1 // pred_fallthru
      _
    // Predicated region
    $region18: #{tpu_custom_call.1} parent=1 // pred_check
      _
    $region19: #{tpu_custom_call.1} parent=1 // pred_check_branch
      %55 = sbr.rel (0) target = $region21
    $region20: #{tpu_custom_call.1} parent=1 // pred_region
      _
    $region21: #{tpu_custom_call.1} parent=1 // pred_fallthru
      _
    // Predicated region
    $region22: #{tpu_custom_call.1} parent=1 // pred_check
      _
    $region23: #{tpu_custom_call.1} parent=1 // pred_check_branch
      %57 = sbr.rel (0) target = $region25
    $region24: #{tpu_custom_call.1} parent=1 // pred_region
      %s59 = ssub.s32 2048, 2048
      %60 = vsyncadd [#allocation9], %s59
      %s61 = sshll.u32 [#allocation8], 4
      %s62 = int_to_ptr.vmem [resolvable:$true] %s61
      %67 = dma.hbm_to_vmem [thread:$0]  %s5, 2048, %s62, [#allocation9], 128, 128, 8
    $region25: #{tpu_custom_call.1} parent=1 // pred_fallthru
      _
    // Predicated region
    $region26: #{tpu_custom_call.1} parent=1 // pred_check
      _
    $region27: #{tpu_custom_call.1} parent=1 // pred_check_branch
      %69 = sbr.rel (0) target = $region29
    $region28: #{tpu_custom_call.1} parent=1 // pred_region
      _
    $region29: #{tpu_custom_call.1} parent=1 // pred_fallthru
      _
    // Predicated region
    $region30: #{tpu_custom_call.1} parent=1 // pred_check
      _
    $region31: #{tpu_custom_call.1} parent=1 // pred_check_branch
      %71 = sbr.rel (0) target = $region33
    $region32: #{tpu_custom_call.1} parent=1 // pred_region
      %72 = dma.done [#allocation3], 128
    $region33: #{tpu_custom_call.1} parent=1 // pred_fallthru
      _
    // Predicated region
    $region34: #{tpu_custom_call.1} parent=1 // pred_check
      _
    $region35: #{tpu_custom_call.1} parent=1 // pred_check_branch
      %74 = sbr.rel (0) target = $region37
    $region36: #{tpu_custom_call.1} parent=1 // pred_region
      %75 = dma.done [#allocation6], 384
    $region37: #{tpu_custom_call.1} parent=1 // pred_fallthru
      _
    // Predicated region
    $region38: #{tpu_custom_call.1} parent=1 // pred_check
      _
    $region39: #{tpu_custom_call.1} parent=1 // pred_check_branch
      %77 = sbr.rel (0) target = $region41
    $region40: #{tpu_custom_call.1} parent=1 // pred_region
      %78 = dma.done [#allocation6], 2048
    $region41: #{tpu_custom_call.1} parent=1 // pred_fallthru
      _
    // Predicated region
    $region42: #{tpu_custom_call.1} parent=1 // pred_check
      _
    $region43: #{tpu_custom_call.1} parent=1 // pred_check_branch
      %80 = sbr.rel (0) target = $region45
    $region44: #{tpu_custom_call.1} parent=1 // pred_region
      %81 = dma.done [#allocation9], 2048
    $region45: #{tpu_custom_call.1} parent=1 // pred_fallthru
      _
    %v82 = vld [vmem:[#allocation2] sm:$0xff]
    %v83 = vld [vmem:[#allocation5] sm:$0xff]
    %v84 = vld [vmem:[#allocation5 + $0x8] sm:$0xff]
    %v85 = vld [vmem:[#allocation5 + $0x10] sm:$0x1]
    %v86 = vld [vmem:[%s2] sm:$0x1]
    %v88 = vlaneseq
    %v89 = vshrl.u32 %v88, 7
    %v90 = vsub.s32 0, %v89
    %v91 = vrot.slane %v86, %v90
    %vm93 = vcmask 138240
    %v95 = vsel %vm93, %v82, 0
    %vm97 = vcmask 1040384
    %v99 = vsel %vm97, %v85, 0
    %101 = vmatprep.subr.mxu0 0.0
    %102 = vmatpush1.msra.mxu0 %v83
    %103 = vmatprep.subr.mxu0 0.0
    %104 = vmatpush1.msra.mxu0 %v84
    %105 = vmatprep.subr.mxu0 0.0
    %106 = vmatpush1.msra.mxu0 %v99
    %107 = vmatprep.subr.mxu0 0.0
    %108 = vmatpush1.msra.mxu0 0.0
    %109 = vmatprep.subr.mxu0 0.0
    %110 = vmatpush1.msra.mxu0 0.0
    %111 = vmatprep.subr.mxu0 0.0
    %112 = vmatpush1.msra.mxu0 0.0
    %113 = vmatprep.subr.mxu0 0.0
    %114 = vmatpush1.msra.mxu0 0.0
    %115 = vmatprep.subr.mxu0 0.0
    %116 = vmatpush1.msra.mxu0 0.0
    %117 = vmatprep.subr.mxu0 0.0
    %118 = vmatpush1.msra.mxu0 0.0
    %119 = vmatprep.subr.mxu0 0.0
    %120 = vmatpush1.msra.mxu0 0.0
    %121 = vmatprep.subr.mxu0 0.0
    %122 = vmatpush1.msra.mxu0 0.0
    %123 = vmatprep.subr.mxu0 0.0
    %124 = vmatpush1.msra.mxu0 0.0
    %125 = vmatprep.subr.mxu0 0.0
    %126 = vmatpush1.msra.mxu0 0.0
    %127 = vmatprep.subr.mxu0 0.0
    %128 = vmatpush1.msra.mxu0 0.0
    %129 = vmatprep.subr.mxu0 0.0
    %130 = vmatpush1.msra.mxu0 0.0
    %131 = vmatprep.subr.mxu0 0.0
    %132 = vmatpush1.msra.mxu0 0.0
    %133 = vmatprep.subr.mxu0 0.0
    %134 = vmatpush1.msra.mxu0 0.0
    %135 = vmatprep.subr.mxu0 0.0
    %136 = vmatpush1.msra.mxu0 0.0
    %137 = vmatprep.subr.mxu0 0.0
    %138 = vmatpush1.msra.mxu0 0.0
    %139 = vmatprep.subr.mxu0 0.0
    %140 = vmatpush1.msra.mxu0 0.0
    %141 = vmatprep.subr.mxu0 0.0
    %142 = vmatpush1.msra.mxu0 0.0
    %143 = vmatprep.subr.mxu0 0.0
    %144 = vmatpush1.msra.mxu0 0.0
    %145 = vmatprep.subr.mxu0 0.0
    %146 = vmatpush1.msra.mxu0 0.0
    %147 = vmatprep.subr.mxu0 0.0
    %148 = vmatpush1.msra.mxu0 0.0
    %149 = vmatprep.subr.mxu0 0.0
    %150 = vmatpush1.msra.mxu0 0.0
    %151 = vmatprep.subr.mxu0 0.0
    %152 = vmatpush1.msra.mxu0 0.0
    %153 = vmatprep.subr.mxu0 0.0
    %154 = vmatpush1.msra.mxu0 0.0
    %155 = vmatprep.subr.mxu0 0.0
    %156 = vmatpush1.msra.mxu0 0.0
    %157 = vmatprep.subr.mxu0 0.0
    %158 = vmatpush1.msra.mxu0 0.0
    %159 = vmatprep.subr.mxu0 0.0
    %160 = vmatpush1.msra.mxu0 0.0
    %161 = vmatprep.subr.mxu0 0.0
    %162 = vmatpush1.msra.mxu0 0.0
    %163 = vmatprep.subr.mxu0 0.0
    %164 = vmatpush1.msra.mxu0 0.0
    %165 = vmatprep.mubr.f32.mxu0 0.0
    %166 = vmatmul.mubr.f32.gmra.mrb[0].mxu0 %v95
    %v167 = vpop.f32.mrb[0].mxu0
    %v168 = vadd.f32 %v91, %v167
    %v169 = vpop.f32.mrb[0].mxu0
    %170 = vdwg.mxu0
    %v171 = vmax.f32 %v168, 0.0
    %v172 = vld [vmem:[#allocation7] sm:$0xff]
    %v173 = vld [vmem:[#allocation7 + $0x8] sm:$0xff]
    %v174 = vld [vmem:[#allocation7 + $0x10] sm:$0xff]
    %v175 = vld [vmem:[#allocation7 + $0x18] sm:$0xff]
    %v176 = vld [vmem:[#allocation7 + $0x20] sm:$0xff]
    %v177 = vld [vmem:[#allocation7 + $0x28] sm:$0xff]
    %v178 = vld [vmem:[#allocation7 + $0x30] sm:$0xff]
    %v179 = vld [vmem:[#allocation7 + $0x38] sm:$0xff]
    %v180 = vld [vmem:[#allocation7 + $0x40] sm:$0xff]
    %v181 = vld [vmem:[#allocation7 + $0x48] sm:$0xff]
    %v182 = vld [vmem:[#allocation7 + $0x50] sm:$0xff]
    %v183 = vld [vmem:[#allocation7 + $0x58] sm:$0xff]
    %v184 = vld [vmem:[#allocation7 + $0x60] sm:$0xff]
    %v185 = vld [vmem:[#allocation7 + $0x68] sm:$0xff]
    %v186 = vld [vmem:[#allocation7 + $0x70] sm:$0xff]
    %v187 = vld [vmem:[#allocation7 + $0x78] sm:$0xff]
    %v188 = vld [vmem:[%s4] sm:$0x1]
    %v190 = vlaneseq
    %v191 = vshrl.u32 %v190, 7
    %v192 = vsub.s32 0, %v191
    %v193 = vrot.slane %v188, %v192
    %195 = vmatprep.subr.mxu0 0.0
    %196 = vmatpush1.msra.mxu0 %v172
    %197 = vmatprep.subr.mxu0 0.0
    %198 = vmatpush1.msra.mxu0 %v173
    %199 = vmatprep.subr.mxu0 0.0
    %200 = vmatpush1.msra.mxu0 %v174
    %201 = vmatprep.subr.mxu0 0.0
    %202 = vmatpush1.msra.mxu0 %v175
    %203 = vmatprep.subr.mxu0 0.0
    %204 = vmatpush1.msra.mxu0 %v176
    %205 = vmatprep.subr.mxu0 0.0
    %206 = vmatpush1.msra.mxu0 %v177
    %207 = vmatprep.subr.mxu0 0.0
    %208 = vmatpush1.msra.mxu0 %v178
    %209 = vmatprep.subr.mxu0 0.0
    %210 = vmatpush1.msra.mxu0 %v179
    %211 = vmatprep.subr.mxu0 0.0
    %212 = vmatpush1.msra.mxu0 %v180
    %213 = vmatprep.subr.mxu0 0.0
    %214 = vmatpush1.msra.mxu0 %v181
    %215 = vmatprep.subr.mxu0 0.0
    %216 = vmatpush1.msra.mxu0 %v182
    %217 = vmatprep.subr.mxu0 0.0
    %218 = vmatpush1.msra.mxu0 %v183
    %219 = vmatprep.subr.mxu0 0.0
    %220 = vmatpush1.msra.mxu0 %v184
    %221 = vmatprep.subr.mxu0 0.0
    %222 = vmatpush1.msra.mxu0 %v185
    %223 = vmatprep.subr.mxu0 0.0
    %224 = vmatpush1.msra.mxu0 %v186
    %225 = vmatprep.subr.mxu0 0.0
    %226 = vmatpush1.msra.mxu0 %v187
    %227 = vmatprep.subr.mxu0 0.0
    %228 = vmatpush1.msra.mxu0 0.0
    %229 = vmatprep.subr.mxu0 0.0
    %230 = vmatpush1.msra.mxu0 0.0
    %231 = vmatprep.subr.mxu0 0.0
    %232 = vmatpush1.msra.mxu0 0.0
    %233 = vmatprep.subr.mxu0 0.0
    %234 = vmatpush1.msra.mxu0 0.0
    %235 = vmatprep.subr.mxu0 0.0
    %236 = vmatpush1.msra.mxu0 0.0
    %237 = vmatprep.subr.mxu0 0.0
    %238 = vmatpush1.msra.mxu0 0.0
    %239 = vmatprep.subr.mxu0 0.0
    %240 = vmatpush1.msra.mxu0 0.0
    %241 = vmatprep.subr.mxu0 0.0
    %242 = vmatpush1.msra.mxu0 0.0
    %243 = vmatprep.subr.mxu0 0.0
    %244 = vmatpush1.msra.mxu0 0.0
    %245 = vmatprep.subr.mxu0 0.0
    %246 = vmatpush1.msra.mxu0 0.0
    %247 = vmatprep.subr.mxu0 0.0
    %248 = vmatpush1.msra.mxu0 0.0
    %249 = vmatprep.subr.mxu0 0.0
    %250 = vmatpush1.msra.mxu0 0.0
    %251 = vmatprep.subr.mxu0 0.0
    %252 = vmatpush1.msra.mxu0 0.0
    %253 = vmatprep.subr.mxu0 0.0
    %254 = vmatpush1.msra.mxu0 0.0
    %255 = vmatprep.subr.mxu0 0.0
    %256 = vmatpush1.msra.mxu0 0.0
    %257 = vmatprep.subr.mxu0 0.0
    %258 = vmatpush1.msra.mxu0 0.0
    %259 = vmatprep.mubr.f32.mxu0 0.0
    %260 = vmatmul.mubr.f32.gmra.mrb[0].mxu0 %v171
    %v261 = vpop.f32.mrb[0].mxu0
    %v262 = vadd.f32 %v193, %v261
    %v263 = vpop.f32.mrb[0].mxu0
    %264 = vdwg.mxu0
    %v265 = vmax.f32 %v262, 0.0
    %v266 = vld [vmem:[#allocation8] sm:$0xff]
    %v267 = vld [vmem:[#allocation8 + $0x8] sm:$0xff]
    %v268 = vld [vmem:[#allocation8 + $0x10] sm:$0xff]
    %v269 = vld [vmem:[#allocation8 + $0x18] sm:$0xff]
    %v270 = vld [vmem:[#allocation8 + $0x20] sm:$0xff]
    %v271 = vld [vmem:[#allocation8 + $0x28] sm:$0xff]
    %v272 = vld [vmem:[#allocation8 + $0x30] sm:$0xff]
    %v273 = vld [vmem:[#allocation8 + $0x38] sm:$0xff]
    %v274 = vld [vmem:[#allocation8 + $0x40] sm:$0xff]
    %v275 = vld [vmem:[#allocation8 + $0x48] sm:$0xff]
    %v276 = vld [vmem:[#allocation8 + $0x50] sm:$0xff]
    %v277 = vld [vmem:[#allocation8 + $0x58] sm:$0xff]
    %v278 = vld [vmem:[#allocation8 + $0x60] sm:$0xff]
    %v279 = vld [vmem:[#allocation8 + $0x68] sm:$0xff]
    %v280 = vld [vmem:[#allocation8 + $0x70] sm:$0xff]
    %v281 = vld [vmem:[#allocation8 + $0x78] sm:$0xff]
    %v282 = vld [vmem:[%s6] sm:$0x1]
    %v284 = vlaneseq
    %v285 = vshrl.u32 %v284, 7
    %v286 = vsub.s32 0, %v285
    %v287 = vrot.slane %v282, %v286
    %289 = vmatprep.subr.mxu0 0.0
    %290 = vmatpush1.msra.mxu0 %v266
    %291 = vmatprep.subr.mxu0 0.0
    %292 = vmatpush1.msra.mxu0 %v267
    %293 = vmatprep.subr.mxu0 0.0
    %294 = vmatpush1.msra.mxu0 %v268
    %295 = vmatprep.subr.mxu0 0.0
    %296 = vmatpush1.msra.mxu0 %v269
    %297 = vmatprep.subr.mxu0 0.0
    %298 = vmatpush1.msra.mxu0 %v270
    %299 = vmatprep.subr.mxu0 0.0
    %300 = vmatpush1.msra.mxu0 %v271
    %301 = vmatprep.subr.mxu0 0.0
    %302 = vmatpush1.msra.mxu0 %v272
    %303 = vmatprep.subr.mxu0 0.0
    %304 = vmatpush1.msra.mxu0 %v273
    %305 = vmatprep.subr.mxu0 0.0
    %306 = vmatpush1.msra.mxu0 %v274
    %307 = vmatprep.subr.mxu0 0.0
    %308 = vmatpush1.msra.mxu0 %v275
    %309 = vmatprep.subr.mxu0 0.0
    %310 = vmatpush1.msra.mxu0 %v276
    %311 = vmatprep.subr.mxu0 0.0
    %312 = vmatpush1.msra.mxu0 %v277
    %313 = vmatprep.subr.mxu0 0.0
    %314 = vmatpush1.msra.mxu0 %v278
    %315 = vmatprep.subr.mxu0 0.0
    %316 = vmatpush1.msra.mxu0 %v279
    %317 = vmatprep.subr.mxu0 0.0
    %318 = vmatpush1.msra.mxu0 %v280
    %319 = vmatprep.subr.mxu0 0.0
    %320 = vmatpush1.msra.mxu0 %v281
    %321 = vmatprep.subr.mxu0 0.0
    %322 = vmatpush1.msra.mxu0 0.0
    %323 = vmatprep.subr.mxu0 0.0
    %324 = vmatpush1.msra.mxu0 0.0
    %325 = vmatprep.subr.mxu0 0.0
    %326 = vmatpush1.msra.mxu0 0.0
    %327 = vmatprep.subr.mxu0 0.0
    %328 = vmatpush1.msra.mxu0 0.0
    %329 = vmatprep.subr.mxu0 0.0
    %330 = vmatpush1.msra.mxu0 0.0
    %331 = vmatprep.subr.mxu0 0.0
    %332 = vmatpush1.msra.mxu0 0.0
    %333 = vmatprep.subr.mxu0 0.0
    %334 = vmatpush1.msra.mxu0 0.0
    %335 = vmatprep.subr.mxu0 0.0
    %336 = vmatpush1.msra.mxu0 0.0
    %337 = vmatprep.subr.mxu0 0.0
    %338 = vmatpush1.msra.mxu0 0.0
    %339 = vmatprep.subr.mxu0 0.0
    %340 = vmatpush1.msra.mxu0 0.0
    %341 = vmatprep.subr.mxu0 0.0
    %342 = vmatpush1.msra.mxu0 0.0
    %343 = vmatprep.subr.mxu0 0.0
    %344 = vmatpush1.msra.mxu0 0.0
    %345 = vmatprep.subr.mxu0 0.0
    %346 = vmatpush1.msra.mxu0 0.0
    %347 = vmatprep.subr.mxu0 0.0
    %348 = vmatpush1.msra.mxu0 0.0
    %349 = vmatprep.subr.mxu0 0.0
    %350 = vmatpush1.msra.mxu0 0.0
    %351 = vmatprep.subr.mxu0 0.0
    %352 = vmatpush1.msra.mxu0 0.0
    %353 = vmatprep.mubr.f32.mxu0 0.0
    %354 = vmatmul.mubr.f32.gmra.mrb[0].mxu0 %v265
    %v355 = vpop.f32.mrb[0].mxu0
    %v356 = vadd.f32 %v287, %v355
    %v357 = vpop.f32.mrb[0].mxu0
    %358 = vdwg.mxu0
    %v359 = vtanh.pop %v356
    %vm360 = vcmask 48128
    %361 = vst.msk [vmem:[#allocation10] sm:$0xff] %vm360, %v359
    // Predicated region
    $region46: #{tpu_custom_call.1} parent=1 // pred_check
      _
    $region47: #{tpu_custom_call.1} parent=1 // pred_check_branch
      %363 = sbr.rel (0) target = $region49
    $region48: #{tpu_custom_call.1} parent=1 // pred_region
      %s365 = ssub.s32 128, 32
      %366 = vsyncadd [#allocation4], %s365
      %s367 = sshll.u32 [#allocation10], 4
      %s368 = int_to_ptr.vmem [resolvable:$true] %s367
      %373 = dma.vmem_to_hbm [thread:$0]  %s368, 32, %s7, [#allocation4], 32, 32, 2
    $region49: #{tpu_custom_call.1} parent=1 // pred_fallthru
      _
    // Predicated region
    $region50: #{tpu_custom_call.1} parent=1 // pred_check
      _
    $region51: #{tpu_custom_call.1} parent=1 // pred_check_branch
      %375 = sbr.rel (0) target = $region53
    $region52: #{tpu_custom_call.1} parent=1 // pred_region
      %376 = dma.done [#allocation4], 128
    $region53: #{tpu_custom_call.1} parent=1 // pred_fallthru
      _
    %377 = vsyncpa [#allocation3], 1
    %378 = vsyncpa [#allocation6], 1
    %379 = vsyncpa [#allocation9], 1
    %380 = vsyncpa [#allocation4], 1

</llo_original>
